<compile_context>
chip_gen: v7x
topology: tpu7x:2x2x1
jax: 0.10.0
libtpu: 0.0.40
codegen_flags: <defaults>
</compile_context>

<pallas_src>
import functools

import jax
import jax.numpy as jnp
from jax.experimental import pallas as pl
from jax.experimental.pallas import tpu as pltpu

HIDDEN = 768        # RoBERTa pooled-output width (fixed by the base model)
DIM = 256           # args.dim
N_CLASSES = 3       # n_classes
C_PAD = 128         # lane-dense padded classifier width
LN_EPS = 1e-5       # torch.nn.LayerNorm default eps


def _round_up(x, m):
    return ((x + m - 1) // m) * m


def _head_kernel(x_ref, w1_ref, b1_ref, g_ref, beta_ref, w2_ref, b2_ref, o_ref):
    # ---- fc: Linear(768 -> DIM), bf16 MXU inputs, f32 accumulation -----------
    xb = x_ref[...].astype(jnp.bfloat16)                           # cast in VMEM
    h = jnp.dot(xb, w1_ref[...], preferred_element_type=jnp.float32)  # (TB, DIM)
    h = h + b1_ref[...]

    # ---- LayerNorm(DIM) -------------------------------------------------------
    mu = jnp.mean(h, axis=-1, keepdims=True)
    xc = h - mu
    var = jnp.mean(xc * xc, axis=-1, keepdims=True)
    hn = xc * jax.lax.rsqrt(var + LN_EPS)
    hn = hn * g_ref[...] + beta_ref[...]                           # (TB, DIM)

    # ---- ReLU -----------------------------------------------------------------
    hr = jnp.maximum(hn, 0.0)

    # ---- classifier: Linear(DIM -> C_PAD padded), bf16 MXU inputs -------------
    logits = jnp.dot(hr.astype(jnp.bfloat16), w2_ref[...],
                     preferred_element_type=jnp.float32)           # (TB, C_PAD)
    # Padded lanes carry bias = -1e9 (pre-baked mask) -> exp() underflows to 0.
    logits = logits + b2_ref[...]

    # ---- Softmax over the lane axis (padded lanes contribute 0) ---------------
    m = jnp.max(logits, axis=-1, keepdims=True)
    e = jnp.exp(logits - m)
    denom = jnp.sum(e, axis=-1, keepdims=True)
    o_ref[...] = e / denom                                         # exact division


def prepare_params(w1, b1, gamma, beta, w2, b2):
    """One-time (model-load) parameter prep: bf16 weights + lane-dense padding."""
    w1b = w1.astype(jnp.bfloat16)                                   # (768, DIM)
    w2p = (jnp.zeros((DIM, C_PAD), jnp.bfloat16)
           .at[:, :N_CLASSES].set(w2.astype(jnp.bfloat16)))         # (DIM, 128)
    # Padded-lane mask baked into the bias: large negative finite value.
    b2p = (jnp.full((1, C_PAD), -1e9, jnp.float32)
           .at[:, :N_CLASSES].set(b2.reshape(1, N_CLASSES)))
    return (w1b, b1.reshape(1, DIM), gamma.reshape(1, DIM),
            beta.reshape(1, DIM), w2p, b2p)


@functools.partial(jax.jit, static_argnames=("tb",))
def sentiment_head(x, w1b, b1, gamma, beta, w2p, b2p, *, tb=2048):
    """x: (B, 768) pooled f32 features -> (B, N_CLASSES) class probabilities."""
    B = x.shape[0]

    # Batch tile: >= 2 tiles whenever B >= 16 (megacore on v7x + DMA overlap),
    # rows a multiple of 8, capped by tb (default 2048 amortizes step overhead).
    if B >= 16:
        target = _round_up(pl.cdiv(B, 2), 8)
    else:
        target = _round_up(B, 8)
    TB = _round_up(min(max(tb, 8), target), 8)
    grid = (pl.cdiv(B, TB),)        # last block is padded/masked by Pallas

    resident = lambda shape: pl.BlockSpec(shape, lambda i: (0, 0))

    out = pl.pallas_call(
        _head_kernel,
        out_shape=jax.ShapeDtypeStruct((B, C_PAD), jnp.float32),
        grid=grid,
        in_specs=[
            pl.BlockSpec((TB, HIDDEN), lambda i: (i, 0)),   # x tile (pipelined, f32)
            resident((HIDDEN, DIM)),                        # fc weight (bf16)
            resident((1, DIM)),                             # fc bias
            resident((1, DIM)),                             # layernorm gamma
            resident((1, DIM)),                             # layernorm beta
            resident((DIM, C_PAD)),                         # classifier weight (bf16, padded)
            resident((1, C_PAD)),                           # classifier bias (mask baked in)
        ],
        out_specs=pl.BlockSpec((TB, C_PAD), lambda i: (i, 0)),
        compiler_params=pltpu.CompilerParams(
            dimension_semantics=("parallel",),              # megacore on v7x
            vmem_limit_bytes=32 * 1024 * 1024,              # safe on v5e/v6e/v7x
        ),
    )(x, w1b, b1, gamma, beta, w2p, b2p)

    return out[:, :N_CLASSES]


def _torch_linear_init(key, fan_in, fan_out):
    """Deterministic init mimicking torch.nn.Linear (uniform(-1/sqrt(fan_in)))."""
    kw, kb = jax.random.split(key)
    bound = 1.0 / jnp.sqrt(fan_in)
    w = jax.random.uniform(kw, (fan_in, fan_out), jnp.float32, -bound, bound)
    b = jax.random.uniform(kb, (1, fan_out), jnp.float32, -bound, bound)
    return w, b


def _reference(x, w1, b1, gamma, beta, w2, b2, *, bf16=True):
    """Pure-JAX head.  bf16=True matches the kernel's bf16 MXU inputs."""
    def q(a):
        return a.astype(jnp.bfloat16).astype(jnp.float32) if bf16 else a
    h = q(x) @ q(w1) + b1
    mu = jnp.mean(h, axis=-1, keepdims=True)
    var = jnp.mean((h - mu) ** 2, axis=-1, keepdims=True)
    hn = (h - mu) * jax.lax.rsqrt(var + LN_EPS) * gamma + beta
    hr = jnp.maximum(hn, 0.0)
    logits = q(hr) @ q(w2) + b2
    return jax.nn.softmax(logits, axis=1)


if __name__ == "__main__":
    key = jax.random.PRNGKey(0)
    k_x, k_fc, k_cls = jax.random.split(key, 3)

    w1, b1 = _torch_linear_init(k_fc, HIDDEN, DIM)
    w2, b2 = _torch_linear_init(k_cls, DIM, N_CLASSES)
    gamma = jnp.ones((1, DIM), jnp.float32)   # LayerNorm weight
    beta = jnp.zeros((1, DIM), jnp.float32)   # LayerNorm bias

    params = prepare_params(w1, b1, gamma, beta, w2, b2)   # once, at "load" time

    # Case 1: small batch, single grid step.
    B = 8
    x = jax.random.normal(k_x, (B, HIDDEN), jnp.float32)
    out = jax.block_until_ready(sentiment_head(x, *params))
    ref = _reference(x, w1, b1, gamma, beta, w2, b2)
    assert out.shape == (B, N_CLASSES)
    assert jnp.allclose(out, ref, atol=2e-3, rtol=2e-3), "mismatch vs reference (B=8)"
    assert jnp.allclose(jnp.sum(out, axis=1), 1.0, atol=1e-3), "softmax rows must sum to 1"
    # Loose check against the pure-f32 PyTorch-equivalent head (bf16 MXU drift only).
    ref_f32 = _reference(x, w1, b1, gamma, beta, w2, b2, bf16=False)
    assert jnp.allclose(out, ref_f32, atol=5e-2), "drift vs f32 reference too large"

    # Case 2: multi-tile grid with a partial last block (B=20, TB=8 -> grid=(3,)).
    B2 = 20
    x2 = jax.random.normal(jax.random.PRNGKey(1), (B2, HIDDEN), jnp.float32)
    out2 = jax.block_until_ready(sentiment_head(x2, *params, tb=8))
    ref2 = _reference(x2, w1, b1, gamma, beta, w2, b2)
    assert out2.shape == (B2, N_CLASSES)
    assert jnp.allclose(out2, ref2, atol=2e-3, rtol=2e-3), "mismatch vs reference (B=20)"
    assert jnp.allclose(jnp.sum(out2, axis=1), 1.0, atol=1e-3), "softmax rows must sum to 1"

    print("KERNEL_OK")
</pallas_src>

<mosaic_0001>
module attributes {stable_mosaic.version = 11 : i64} {
  func.func @_head_kernel(%arg0: i32, %arg1: memref<8x768xf32, #tpu.memory_space<vmem>>, %arg2: memref<768x256xbf16, #tpu.memory_space<vmem>>, %arg3: memref<1x256xf32, #tpu.memory_space<vmem>>, %arg4: memref<1x256xf32, #tpu.memory_space<vmem>>, %arg5: memref<1x256xf32, #tpu.memory_space<vmem>>, %arg6: memref<256x128xbf16, #tpu.memory_space<vmem>>, %arg7: memref<1x128xf32, #tpu.memory_space<vmem>>, %arg8: memref<8x128xf32, #tpu.memory_space<vmem>>) attributes {dimension_semantics = [#tpu.dimension_semantics<parallel>], iteration_bounds = array<i64: 1>, scalar_prefetch = 0 : i64, scratch_operands = 0 : i64, tpu.core_type = #tpu.core_type<tc>, window_params = [{transform_indices = @transform_0, window_bounds = array<i64: 8, 768>}, {pipeline_mode = #tpu.pipeline_mode<synchronous>, transform_indices = @transform_1, window_bounds = array<i64: 768, 256>}, {pipeline_mode = #tpu.pipeline_mode<synchronous>, transform_indices = @transform_2, window_bounds = array<i64: 1, 256>}, {pipeline_mode = #tpu.pipeline_mode<synchronous>, transform_indices = @transform_3, window_bounds = array<i64: 1, 256>}, {pipeline_mode = #tpu.pipeline_mode<synchronous>, transform_indices = @transform_4, window_bounds = array<i64: 1, 256>}, {pipeline_mode = #tpu.pipeline_mode<synchronous>, transform_indices = @transform_5, window_bounds = array<i64: 256, 128>}, {pipeline_mode = #tpu.pipeline_mode<synchronous>, transform_indices = @transform_6, window_bounds = array<i64: 1, 128>}, {transform_indices = @transform_7, window_bounds = array<i64: 8, 128>}]} {
    %c0 = arith.constant 0 : index
    %c0_0 = arith.constant 0 : index
    %0 = vector.load %arg1[%c0, %c0_0] : memref<8x768xf32, #tpu.memory_space<vmem>>, vector<8x768xf32>
    %1 = arith.truncf %0 : vector<8x768xf32> to vector<8x768xbf16>
    %c0_1 = arith.constant 0 : index
    %c0_2 = arith.constant 0 : index
    %2 = vector.load %arg2[%c0_1, %c0_2] : memref<768x256xbf16, #tpu.memory_space<vmem>>, vector<768x256xbf16>
    %cst = arith.constant dense<0.000000e+00> : vector<8x256xf32>
    %3 = tpu.matmul %1, %2, %cst {dimension_numbers = #tpu.dot_dimension_numbers<[1], [0], [0], [1], [0, 0, 1, 1], [], []>} : vector<8x768xbf16>, vector<768x256xbf16>, vector<8x256xf32> -> vector<8x256xf32>
    %c0_3 = arith.constant 0 : index
    %c0_4 = arith.constant 0 : index
    %4 = vector.load %arg3[%c0_3, %c0_4] : memref<1x256xf32, #tpu.memory_space<vmem>>, vector<1x256xf32>
    %5 = vector.broadcast %4 : vector<1x256xf32> to vector<8x256xf32>
    %6 = arith.addf %3, %5 : vector<8x256xf32>
    %cst_5 = arith.constant dense<0.000000e+00> : vector<8xf32>
    %7 = vector.multi_reduction <add>, %6, %cst_5 [1] : vector<8x256xf32> to vector<8xf32>
    %8 = vector.shape_cast %7 : vector<8xf32> to vector<8x1xf32>
    %cst_6 = arith.constant 2.560000e+02 : f32
    %9 = vector.broadcast %cst_6 : f32 to vector<8x1xf32>
    %10 = arith.divf %8, %9 : vector<8x1xf32>
    %11 = vector.broadcast %10 : vector<8x1xf32> to vector<8x256xf32>
    %12 = arith.subf %6, %11 : vector<8x256xf32>
    %13 = arith.mulf %12, %12 : vector<8x256xf32>
    %cst_7 = arith.constant dense<0.000000e+00> : vector<8xf32>
    %14 = vector.multi_reduction <add>, %13, %cst_7 [1] : vector<8x256xf32> to vector<8xf32>
    %15 = vector.shape_cast %14 : vector<8xf32> to vector<8x1xf32>
    %cst_8 = arith.constant 2.560000e+02 : f32
    %16 = vector.broadcast %cst_8 : f32 to vector<8x1xf32>
    %17 = arith.divf %15, %16 : vector<8x1xf32>
    %cst_9 = arith.constant 9.99999974E-6 : f32
    %18 = vector.broadcast %cst_9 : f32 to vector<8x1xf32>
    %19 = arith.addf %17, %18 : vector<8x1xf32>
    %20 = math.rsqrt %19 : vector<8x1xf32>
    %21 = vector.broadcast %20 : vector<8x1xf32> to vector<8x256xf32>
    %22 = arith.mulf %12, %21 : vector<8x256xf32>
    %c0_10 = arith.constant 0 : index
    %c0_11 = arith.constant 0 : index
    %23 = vector.load %arg4[%c0_10, %c0_11] : memref<1x256xf32, #tpu.memory_space<vmem>>, vector<1x256xf32>
    %24 = vector.broadcast %23 : vector<1x256xf32> to vector<8x256xf32>
    %25 = arith.mulf %22, %24 : vector<8x256xf32>
    %c0_12 = arith.constant 0 : index
    %c0_13 = arith.constant 0 : index
    %26 = vector.load %arg5[%c0_12, %c0_13] : memref<1x256xf32, #tpu.memory_space<vmem>>, vector<1x256xf32>
    %27 = vector.broadcast %26 : vector<1x256xf32> to vector<8x256xf32>
    %28 = arith.addf %25, %27 : vector<8x256xf32>
    %cst_14 = arith.constant 0.000000e+00 : f32
    %29 = vector.broadcast %cst_14 : f32 to vector<8x256xf32>
    %30 = arith.maximumf %28, %29 : vector<8x256xf32>
    %31 = arith.truncf %30 : vector<8x256xf32> to vector<8x256xbf16>
    %c0_15 = arith.constant 0 : index
    %c0_16 = arith.constant 0 : index
    %32 = vector.load %arg6[%c0_15, %c0_16] : memref<256x128xbf16, #tpu.memory_space<vmem>>, vector<256x128xbf16>
    %cst_17 = arith.constant dense<0.000000e+00> : vector<8x128xf32>
    %33 = tpu.matmul %31, %32, %cst_17 {dimension_numbers = #tpu.dot_dimension_numbers<[1], [0], [0], [1], [0, 0, 1, 1], [], []>} : vector<8x256xbf16>, vector<256x128xbf16>, vector<8x128xf32> -> vector<8x128xf32>
    %c0_18 = arith.constant 0 : index
    %c0_19 = arith.constant 0 : index
    %34 = vector.load %arg7[%c0_18, %c0_19] : memref<1x128xf32, #tpu.memory_space<vmem>>, vector<1x128xf32>
    %35 = vector.broadcast %34 : vector<1x128xf32> to vector<8x128xf32>
    %36 = arith.addf %33, %35 : vector<8x128xf32>
    %cst_20 = arith.constant dense<0xFF800000> : vector<8xf32>
    %37 = vector.multi_reduction <maximumf>, %36, %cst_20 [1] : vector<8x128xf32> to vector<8xf32>
    %38 = vector.shape_cast %37 : vector<8xf32> to vector<8x1xf32>
    %39 = vector.broadcast %38 : vector<8x1xf32> to vector<8x128xf32>
    %40 = arith.subf %36, %39 : vector<8x128xf32>
    %41 = math.exp %40 : vector<8x128xf32>
    %cst_21 = arith.constant dense<0.000000e+00> : vector<8xf32>
    %42 = vector.multi_reduction <add>, %41, %cst_21 [1] : vector<8x128xf32> to vector<8xf32>
    %43 = vector.shape_cast %42 : vector<8xf32> to vector<8x1xf32>
    %44 = vector.broadcast %43 : vector<8x1xf32> to vector<8x128xf32>
    %45 = arith.divf %41, %44 : vector<8x128xf32>
    %c0_22 = arith.constant 0 : index
    %c0_23 = arith.constant 0 : index
    %46 = vector.load %arg8[%c0_22, %c0_23] : memref<8x128xf32, #tpu.memory_space<vmem>>, vector<8x128xf32>
    tpu.vector_store %arg8[%c0_22, %c0_23], %45 {strides = array<i32>} : memref<8x128xf32, #tpu.memory_space<vmem>>, vector<8x128xf32>,
    return
  }
  func.func @transform_0(%arg0: i32) -> (i32, i32) {
    %c0_i32 = arith.constant 0 : i32
    %c0_i32_0 = arith.constant 0 : i32
    return %arg0, %c0_i32 : i32, i32
  }
  func.func @transform_1(%arg0: i32) -> (i32, i32) {
    %c0_i32 = arith.constant 0 : i32
    %c0_i32_0 = arith.constant 0 : i32
    %c0_i32_1 = arith.constant 0 : i32
    return %c0_i32, %c0_i32_0 : i32, i32
  }
  func.func @transform_2(%arg0: i32) -> (i32, i32) {
    %c0_i32 = arith.constant 0 : i32
    %c0_i32_0 = arith.constant 0 : i32
    %c0_i32_1 = arith.constant 0 : i32
    return %c0_i32, %c0_i32_0 : i32, i32
  }
  func.func @transform_3(%arg0: i32) -> (i32, i32) {
    %c0_i32 = arith.constant 0 : i32
    %c0_i32_0 = arith.constant 0 : i32
    %c0_i32_1 = arith.constant 0 : i32
    return %c0_i32, %c0_i32_0 : i32, i32
  }
  func.func @transform_4(%arg0: i32) -> (i32, i32) {
    %c0_i32 = arith.constant 0 : i32
    %c0_i32_0 = arith.constant 0 : i32
    %c0_i32_1 = arith.constant 0 : i32
    return %c0_i32, %c0_i32_0 : i32, i32
  }
  func.func @transform_5(%arg0: i32) -> (i32, i32) {
    %c0_i32 = arith.constant 0 : i32
    %c0_i32_0 = arith.constant 0 : i32
    %c0_i32_1 = arith.constant 0 : i32
    return %c0_i32, %c0_i32_0 : i32, i32
  }
  func.func @transform_6(%arg0: i32) -> (i32, i32) {
    %c0_i32 = arith.constant 0 : i32
    %c0_i32_0 = arith.constant 0 : i32
    %c0_i32_1 = arith.constant 0 : i32
    return %c0_i32, %c0_i32_0 : i32, i32
  }
  func.func @transform_7(%arg0: i32) -> (i32, i32) {
    %c0_i32 = arith.constant 0 : i32
    %c0_i32_0 = arith.constant 0 : i32
    return %arg0, %c0_i32 : i32, i32
  }
}

</mosaic_0001>

<llo_original>
// kernel: sentiment_head.1
$region0: #{sentiment_head.1}
  #allocation0 [shape = 'u32[]', space=smem, size = 0x4, offset = 0x4, fixed_abs, tag = 'smem constant byte address 0x4 - core index']
  #allocation1 [shape = 'u32[144,128]{1,0:T(1,128)}', space=vmem, size = 0x12000, scoped, tag = 'internal scratch']
  %s0 = inlined_call_operand.hbm [shape: f32[8,768], index: 0, kind: input, shape index: {}]
  %s1 = inlined_call_operand.hbm [shape: bf16[768,256], index: 1, kind: input, shape index: {}]
  %s2 = inlined_call_operand.vmem [shape: f32[1,256], index: 2, kind: input, shape index: {}]
  %s3 = inlined_call_operand.vmem [shape: f32[1,256], index: 3, kind: input, shape index: {}]
  %s4 = inlined_call_operand.vmem [shape: f32[1,256], index: 4, kind: input, shape index: {}]
  %s5 = inlined_call_operand.hbm [shape: bf16[256,128], index: 5, kind: input, shape index: {}]
  %s6 = inlined_call_operand.vmem [shape: f32[1,128], index: 6, kind: input, shape index: {}]
  %s7 = inlined_call_operand.vmem [shape: f32[8,128], index: 7, kind: output, shape index: {}]
  %s8 = sld [smem:[#allocation0]]
  $region50: #{sentiment_head.1} parent=0
    _
  %s10 = ssub.s32 1, %s8
  %s11 = scalar_select 0, %s10, %s8
  $region1: #{sentiment_head.1} parent=0
    #allocation2 [shape = 'u8[24576]{0}', space=vmem, size = 0x6000, scoped, tag = 'input window, operand 0, single buffered']
    #allocation3 [shape = 's32[1]{0}', space=sflag, size = 0x4, scoped, tag = 'scoped memory for sentiment_head.1']
    #allocation4 [shape = 'u8[393216]{0}', space=vmem, size = 0x60000, scoped, tag = 'input window, operand 1, single buffered']
    #allocation5 [shape = 's32[1]{0}', space=sflag, size = 0x4, scoped, tag = 'scoped memory for sentiment_head.1']
    #allocation6 [shape = 'u8[65536]{0}', space=vmem, size = 0x10000, scoped, tag = 'input window, operand 5, single buffered']
    %12 = vsyncpa [#allocation3], 0
    %13 = vsyncpa [#allocation5], 0
    // Predicated region
    $region2: #{sentiment_head.1} parent=1 // pred_check
      _
    $region3: #{sentiment_head.1} parent=1 // pred_check_branch
      %15 = sbr.rel (0) target = $region5
    $region4: #{sentiment_head.1} parent=1 // pred_region
      %s17 = ssub.s32 768, 768
      %18 = vsyncadd [#allocation3], %s17
      %s20 = sshll.u32 [#allocation2], 4
      %s21 = int_to_ptr.vmem [resolvable:$true] %s20
      %23 = dma.hbm_to_vmem [thread:$0]  %s0, 768, %s21, [#allocation3]
    $region5: #{sentiment_head.1} parent=1 // pred_fallthru
      _
    // Predicated region
    $region6: #{sentiment_head.1} parent=1 // pred_check
      _
    $region7: #{sentiment_head.1} parent=1 // pred_check_branch
      %25 = sbr.rel (0) target = $region9
    $region8: #{sentiment_head.1} parent=1 // pred_region
      %s27 = ssub.s32 12288, 12288
      %28 = vsyncadd [#allocation5], %s27
      %s29 = sshll.u32 [#allocation4], 4
      %s30 = int_to_ptr.vmem [resolvable:$true] %s29
      %35 = dma.hbm_to_vmem [thread:$0]  %s1, 12288, %s30, [#allocation5], 128, 128, 8
    $region9: #{sentiment_head.1} parent=1 // pred_fallthru
      _
    // Predicated region
    $region10: #{sentiment_head.1} parent=1 // pred_check
      _
    $region11: #{sentiment_head.1} parent=1 // pred_check_branch
      %37 = sbr.rel (0) target = $region13
    $region12: #{sentiment_head.1} parent=1 // pred_region
      _
    $region13: #{sentiment_head.1} parent=1 // pred_fallthru
      _
    // Predicated region
    $region14: #{sentiment_head.1} parent=1 // pred_check
      _
    $region15: #{sentiment_head.1} parent=1 // pred_check_branch
      %39 = sbr.rel (0) target = $region17
    $region16: #{sentiment_head.1} parent=1 // pred_region
      _
    $region17: #{sentiment_head.1} parent=1 // pred_fallthru
      _
    // Predicated region
    $region18: #{sentiment_head.1} parent=1 // pred_check
      _
    $region19: #{sentiment_head.1} parent=1 // pred_check_branch
      %41 = sbr.rel (0) target = $region21
    $region20: #{sentiment_head.1} parent=1 // pred_region
      _
    $region21: #{sentiment_head.1} parent=1 // pred_fallthru
      _
    // Predicated region
    $region22: #{sentiment_head.1} parent=1 // pred_check
      _
    $region23: #{sentiment_head.1} parent=1 // pred_check_branch
      %43 = sbr.rel (0) target = $region25
    $region24: #{sentiment_head.1} parent=1 // pred_region
      %s45 = ssub.s32 2048, 2048
      %46 = vsyncadd [#allocation5], %s45
      %s47 = sshll.u32 [#allocation6], 4
      %s48 = int_to_ptr.vmem [resolvable:$true] %s47
      %53 = dma.hbm_to_vmem [thread:$0]  %s5, 2048, %s48, [#allocation5], 64, 64, 4
    $region25: #{sentiment_head.1} parent=1 // pred_fallthru
      _
    // Predicated region
    $region26: #{sentiment_head.1} parent=1 // pred_check
      _
    $region27: #{sentiment_head.1} parent=1 // pred_check_branch
      %55 = sbr.rel (0) target = $region29
    $region28: #{sentiment_head.1} parent=1 // pred_region
      _
    $region29: #{sentiment_head.1} parent=1 // pred_fallthru
      _
    // Predicated region
    $region30: #{sentiment_head.1} parent=1 // pred_check
      _
    $region31: #{sentiment_head.1} parent=1 // pred_check_branch
      %57 = sbr.rel (0) target = $region33
    $region32: #{sentiment_head.1} parent=1 // pred_region
      %58 = dma.done [#allocation3], 768
    $region33: #{sentiment_head.1} parent=1 // pred_fallthru
      _
    // Predicated region
    $region34: #{sentiment_head.1} parent=1 // pred_check
      _
    $region35: #{sentiment_head.1} parent=1 // pred_check_branch
      %60 = sbr.rel (0) target = $region37
    $region36: #{sentiment_head.1} parent=1 // pred_region
      %61 = dma.done [#allocation5], 12288
    $region37: #{sentiment_head.1} parent=1 // pred_fallthru
      _
    // Predicated region
    $region38: #{sentiment_head.1} parent=1 // pred_check
      _
    $region39: #{sentiment_head.1} parent=1 // pred_check_branch
      %63 = sbr.rel (0) target = $region41
    $region40: #{sentiment_head.1} parent=1 // pred_region
      %64 = dma.done [#allocation5], 2048
    $region41: #{sentiment_head.1} parent=1 // pred_fallthru
      _
    %v66 = vld [vmem:[#allocation2] sm:$0xff]
    %v67 = vld [vmem:[#allocation2 + $0x8] sm:$0xff]
    %v68 = vld [vmem:[#allocation2 + $0x10] sm:$0xff]
    %v69 = vld [vmem:[#allocation2 + $0x18] sm:$0xff]
    %v70 = vld [vmem:[#allocation2 + $0x20] sm:$0xff]
    %v71 = vld [vmem:[#allocation2 + $0x28] sm:$0xff]
    %v72 = vpack.c.bf16 %v66, %v66
    %v73 = vpack.c.bf16 %v67, %v67
    %v74 = vpack.c.bf16 %v68, %v68
    %v75 = vpack.c.bf16 %v69, %v69
    %v76 = vpack.c.bf16 %v70, %v70
    %v77 = vpack.c.bf16 %v71, %v71
    %v78 = vld [vmem:[#allocation4] sm:$0xff]
    %v79 = vld [vmem:[#allocation4 + $0x8] sm:$0xff]
    %v80 = vld [vmem:[#allocation4 + $0x10] sm:$0xff]
    %v81 = vld [vmem:[#allocation4 + $0x18] sm:$0xff]
    %v82 = vld [vmem:[#allocation4 + $0x20] sm:$0xff]
    %v83 = vld [vmem:[#allocation4 + $0x28] sm:$0xff]
    %v84 = vld [vmem:[#allocation4 + $0x30] sm:$0xff]
    %v85 = vld [vmem:[#allocation4 + $0x38] sm:$0xff]
    %v86 = vld [vmem:[#allocation4 + $0x40] sm:$0xff]
    %v87 = vld [vmem:[#allocation4 + $0x48] sm:$0xff]
    %v88 = vld [vmem:[#allocation4 + $0x50] sm:$0xff]
    %v89 = vld [vmem:[#allocation4 + $0x58] sm:$0xff]
    %v90 = vld [vmem:[#allocation4 + $0x60] sm:$0xff]
    %v91 = vld [vmem:[#allocation4 + $0x68] sm:$0xff]
    %v92 = vld [vmem:[#allocation4 + $0x70] sm:$0xff]
    %v93 = vld [vmem:[#allocation4 + $0x78] sm:$0xff]
    %v94 = vld [vmem:[#allocation4 + $0x80] sm:$0xff]
    %v95 = vld [vmem:[#allocation4 + $0x88] sm:$0xff]
    %v96 = vld [vmem:[#allocation4 + $0x90] sm:$0xff]
    %v97 = vld [vmem:[#allocation4 + $0x98] sm:$0xff]
    %v98 = vld [vmem:[#allocation4 + $0xa0] sm:$0xff]
    %v99 = vld [vmem:[#allocation4 + $0xa8] sm:$0xff]
    %v100 = vld [vmem:[#allocation4 + $0xb0] sm:$0xff]
    %v101 = vld [vmem:[#allocation4 + $0xb8] sm:$0xff]
    %v102 = vld [vmem:[#allocation4 + $0xc0] sm:$0xff]
    %v103 = vld [vmem:[#allocation4 + $0xc8] sm:$0xff]
    %v104 = vld [vmem:[#allocation4 + $0xd0] sm:$0xff]
    %v105 = vld [vmem:[#allocation4 + $0xd8] sm:$0xff]
    %v106 = vld [vmem:[#allocation4 + $0xe0] sm:$0xff]
    %v107 = vld [vmem:[#allocation4 + $0xe8] sm:$0xff]
    %v108 = vld [vmem:[#allocation4 + $0xf0] sm:$0xff]
    %v109 = vld [vmem:[#allocation4 + $0xf8] sm:$0xff]
    %v110 = vld [vmem:[#allocation4 + $0x100] sm:$0xff]
    %v111 = vld [vmem:[#allocation4 + $0x108] sm:$0xff]
    %v112 = vld [vmem:[#allocation4 + $0x110] sm:$0xff]
    %v113 = vld [vmem:[#allocation4 + $0x118] sm:$0xff]
    %v114 = vld [vmem:[#allocation4 + $0x120] sm:$0xff]
    %v115 = vld [vmem:[#allocation4 + $0x128] sm:$0xff]
    %v116 = vld [vmem:[#allocation4 + $0x130] sm:$0xff]
    %v117 = vld [vmem:[#allocation4 + $0x138] sm:$0xff]
    %v118 = vld [vmem:[#allocation4 + $0x140] sm:$0xff]
    %v119 = vld [vmem:[#allocation4 + $0x148] sm:$0xff]
    %v120 = vld [vmem:[#allocation4 + $0x150] sm:$0xff]
    %v121 = vld [vmem:[#allocation4 + $0x158] sm:$0xff]
    %v122 = vld [vmem:[#allocation4 + $0x160] sm:$0xff]
    %v123 = vld [vmem:[#allocation4 + $0x168] sm:$0xff]
    %v124 = vld [vmem:[#allocation4 + $0x170] sm:$0xff]
    %v125 = vld [vmem:[#allocation4 + $0x178] sm:$0xff]
    %v126 = vld [vmem:[#allocation4 + $0x180] sm:$0xff]
    %v127 = vld [vmem:[#allocation4 + $0x188] sm:$0xff]
    %v128 = vld [vmem:[#allocation4 + $0x190] sm:$0xff]
    %v129 = vld [vmem:[#allocation4 + $0x198] sm:$0xff]
    %v130 = vld [vmem:[#allocation4 + $0x1a0] sm:$0xff]
    %v131 = vld [vmem:[#allocation4 + $0x1a8] sm:$0xff]
    %v132 = vld [vmem:[#allocation4 + $0x1b0] sm:$0xff]
    %v133 = vld [vmem:[#allocation4 + $0x1b8] sm:$0xff]
    %v134 = vld [vmem:[#allocation4 + $0x1c0] sm:$0xff]
    %v135 = vld [vmem:[#allocation4 + $0x1c8] sm:$0xff]
    %v136 = vld [vmem:[#allocation4 + $0x1d0] sm:$0xff]
    %v137 = vld [vmem:[#allocation4 + $0x1d8] sm:$0xff]
    %v138 = vld [vmem:[#allocation4 + $0x1e0] sm:$0xff]
    %v139 = vld [vmem:[#allocation4 + $0x1e8] sm:$0xff]
    %v140 = vld [vmem:[#allocation4 + $0x1f0] sm:$0xff]
    %v141 = vld [vmem:[#allocation4 + $0x1f8] sm:$0xff]
    %v142 = vld [vmem:[#allocation4 + $0x200] sm:$0xff]
    %v143 = vld [vmem:[#allocation4 + $0x208] sm:$0xff]
    %v144 = vld [vmem:[#allocation4 + $0x210] sm:$0xff]
    %v145 = vld [vmem:[#allocation4 + $0x218] sm:$0xff]
    %v146 = vld [vmem:[#allocation4 + $0x220] sm:$0xff]
    %v147 = vld [vmem:[#allocation4 + $0x228] sm:$0xff]
    %v148 = vld [vmem:[#allocation4 + $0x230] sm:$0xff]
    %v149 = vld [vmem:[#allocation4 + $0x238] sm:$0xff]
    %v150 = vld [vmem:[#allocation4 + $0x240] sm:$0xff]
    %v151 = vld [vmem:[#allocation4 + $0x248] sm:$0xff]
    %v152 = vld [vmem:[#allocation4 + $0x250] sm:$0xff]
    %v153 = vld [vmem:[#allocation4 + $0x258] sm:$0xff]
    %v154 = vld [vmem:[#allocation4 + $0x260] sm:$0xff]
    %v155 = vld [vmem:[#allocation4 + $0x268] sm:$0xff]
    %v156 = vld [vmem:[#allocation4 + $0x270] sm:$0xff]
    %v157 = vld [vmem:[#allocation4 + $0x278] sm:$0xff]
    %v158 = vld [vmem:[#allocation4 + $0x280] sm:$0xff]
    %v159 = vld [vmem:[#allocation4 + $0x288] sm:$0xff]
    %v160 = vld [vmem:[#allocation4 + $0x290] sm:$0xff]
    %v161 = vld [vmem:[#allocation4 + $0x298] sm:$0xff]
    %v162 = vld [vmem:[#allocation4 + $0x2a0] sm:$0xff]
    %v163 = vld [vmem:[#allocation4 + $0x2a8] sm:$0xff]
    %v164 = vld [vmem:[#allocation4 + $0x2b0] sm:$0xff]
    %v165 = vld [vmem:[#allocation4 + $0x2b8] sm:$0xff]
    %v166 = vld [vmem:[#allocation4 + $0x2c0] sm:$0xff]
    %v167 = vld [vmem:[#allocation4 + $0x2c8] sm:$0xff]
    %v168 = vld [vmem:[#allocation4 + $0x2d0] sm:$0xff]
    %v169 = vld [vmem:[#allocation4 + $0x2d8] sm:$0xff]
    %v170 = vld [vmem:[#allocation4 + $0x2e0] sm:$0xff]
    %v171 = vld [vmem:[#allocation4 + $0x2e8] sm:$0xff]
    %v172 = vld [vmem:[#allocation4 + $0x2f0] sm:$0xff]
    %v173 = vld [vmem:[#allocation4 + $0x2f8] sm:$0xff]
    %v174 = vld [vmem:[%s2] sm:$0x3]
    %v176 = vlaneseq
    %v177 = vshrl.u32 %v176, 7
    %v178 = vsub.s32 0, %v177
    %v179 = vrot.slane %v174, %v178
    %v180 = vlaneseq
    %v181 = vshrl.u32 %v180, 7
    %v182 = vsub.s32 1, %v181
    %v183 = vrot.slane %v174, %v182
    %v282 = vunpack.c.l.b16 %v78
    %v283 = vunpack.c.h.b16 %v78
    %v284 = vunpack.c.l.b16 %v79
    %v285 = vunpack.c.h.b16 %v79
    %v286 = vunpack.c.l.b16 %v80
    %v287 = vunpack.c.h.b16 %v80
    %v288 = vunpack.c.l.b16 %v81
    %v289 = vunpack.c.h.b16 %v81
    %v290 = vunpack.c.l.b16 %v82
    %v291 = vunpack.c.h.b16 %v82
    %v292 = vunpack.c.l.b16 %v83
    %v293 = vunpack.c.h.b16 %v83
    %v294 = vunpack.c.l.b16 %v84
    %v295 = vunpack.c.h.b16 %v84
    %v296 = vunpack.c.l.b16 %v85
    %v297 = vunpack.c.h.b16 %v85
    %v298 = vunpack.c.l.b16 %v86
    %v299 = vunpack.c.h.b16 %v86
    %v300 = vunpack.c.l.b16 %v87
    %v301 = vunpack.c.h.b16 %v87
    %v302 = vunpack.c.l.b16 %v88
    %v303 = vunpack.c.h.b16 %v88
    %v304 = vunpack.c.l.b16 %v89
    %v305 = vunpack.c.h.b16 %v89
    %v306 = vunpack.c.l.b16 %v90
    %v307 = vunpack.c.h.b16 %v90
    %v308 = vunpack.c.l.b16 %v91
    %v309 = vunpack.c.h.b16 %v91
    %v310 = vunpack.c.l.b16 %v92
    %v311 = vunpack.c.h.b16 %v92
    %v312 = vunpack.c.l.b16 %v93
    %v313 = vunpack.c.h.b16 %v93
    %v314 = vunpack.c.l.b16 %v94
    %v315 = vunpack.c.h.b16 %v94
    %v316 = vunpack.c.l.b16 %v95
    %v317 = vunpack.c.h.b16 %v95
    %v318 = vunpack.c.l.b16 %v96
    %v319 = vunpack.c.h.b16 %v96
    %v320 = vunpack.c.l.b16 %v97
    %v321 = vunpack.c.h.b16 %v97
    %v322 = vunpack.c.l.b16 %v98
    %v323 = vunpack.c.h.b16 %v98
    %v324 = vunpack.c.l.b16 %v99
    %v325 = vunpack.c.h.b16 %v99
    %v326 = vunpack.c.l.b16 %v100
    %v327 = vunpack.c.h.b16 %v100
    %v328 = vunpack.c.l.b16 %v101
    %v329 = vunpack.c.h.b16 %v101
    %v330 = vunpack.c.l.b16 %v102
    %v331 = vunpack.c.h.b16 %v102
    %v332 = vunpack.c.l.b16 %v103
    %v333 = vunpack.c.h.b16 %v103
    %v334 = vunpack.c.l.b16 %v104
    %v335 = vunpack.c.h.b16 %v104
    %v336 = vunpack.c.l.b16 %v105
    %v337 = vunpack.c.h.b16 %v105
    %v338 = vunpack.c.l.b16 %v106
    %v339 = vunpack.c.h.b16 %v106
    %v340 = vunpack.c.l.b16 %v107
    %v341 = vunpack.c.h.b16 %v107
    %v342 = vunpack.c.l.b16 %v108
    %v343 = vunpack.c.h.b16 %v108
    %v344 = vunpack.c.l.b16 %v109
    %v345 = vunpack.c.h.b16 %v109
    %v346 = vunpack.c.l.b16 %v110
    %v347 = vunpack.c.h.b16 %v110
    %v348 = vunpack.c.l.b16 %v111
    %v349 = vunpack.c.h.b16 %v111
    %v350 = vunpack.c.l.b16 %v112
    %v351 = vunpack.c.h.b16 %v112
    %v352 = vunpack.c.l.b16 %v113
    %v353 = vunpack.c.h.b16 %v113
    %v354 = vunpack.c.l.b16 %v114
    %v355 = vunpack.c.h.b16 %v114
    %v356 = vunpack.c.l.b16 %v115
    %v357 = vunpack.c.h.b16 %v115
    %v358 = vunpack.c.l.b16 %v116
    %v359 = vunpack.c.h.b16 %v116
    %v360 = vunpack.c.l.b16 %v117
    %v361 = vunpack.c.h.b16 %v117
    %v362 = vunpack.c.l.b16 %v118
    %v363 = vunpack.c.h.b16 %v118
    %v364 = vunpack.c.l.b16 %v119
    %v365 = vunpack.c.h.b16 %v119
    %v366 = vunpack.c.l.b16 %v120
    %v367 = vunpack.c.h.b16 %v120
    %v368 = vunpack.c.l.b16 %v121
    %v369 = vunpack.c.h.b16 %v121
    %v370 = vunpack.c.l.b16 %v122
    %v371 = vunpack.c.h.b16 %v122
    %v372 = vunpack.c.l.b16 %v123
    %v373 = vunpack.c.h.b16 %v123
    %v374 = vunpack.c.l.b16 %v124
    %v375 = vunpack.c.h.b16 %v124
    %v376 = vunpack.c.l.b16 %v125
    %v377 = vunpack.c.h.b16 %v125
    %v378 = vunpack.c.l.b16 %v126
    %v379 = vunpack.c.h.b16 %v126
    %v380 = vunpack.c.l.b16 %v127
    %v381 = vunpack.c.h.b16 %v127
    %v382 = vunpack.c.l.b16 %v128
    %v383 = vunpack.c.h.b16 %v128
    %v384 = vunpack.c.l.b16 %v129
    %v385 = vunpack.c.h.b16 %v129
    %v386 = vunpack.c.l.b16 %v130
    %v387 = vunpack.c.h.b16 %v130
    %v388 = vunpack.c.l.b16 %v131
    %v389 = vunpack.c.h.b16 %v131
    %v390 = vunpack.c.l.b16 %v132
    %v391 = vunpack.c.h.b16 %v132
    %v392 = vunpack.c.l.b16 %v133
    %v393 = vunpack.c.h.b16 %v133
    %v394 = vunpack.c.l.b16 %v134
    %v395 = vunpack.c.h.b16 %v134
    %v396 = vunpack.c.l.b16 %v135
    %v397 = vunpack.c.h.b16 %v135
    %v398 = vunpack.c.l.b16 %v136
    %v399 = vunpack.c.h.b16 %v136
    %v400 = vunpack.c.l.b16 %v137
    %v401 = vunpack.c.h.b16 %v137
    %v402 = vunpack.c.l.b16 %v138
    %v403 = vunpack.c.h.b16 %v138
    %v404 = vunpack.c.l.b16 %v139
    %v405 = vunpack.c.h.b16 %v139
    %v406 = vunpack.c.l.b16 %v140
    %v407 = vunpack.c.h.b16 %v140
    %v408 = vunpack.c.l.b16 %v141
    %v409 = vunpack.c.h.b16 %v141
    %v410 = vunpack.c.l.b16 %v142
    %v411 = vunpack.c.h.b16 %v142
    %v412 = vunpack.c.l.b16 %v143
    %v413 = vunpack.c.h.b16 %v143
    %v414 = vunpack.c.l.b16 %v144
    %v415 = vunpack.c.h.b16 %v144
    %v416 = vunpack.c.l.b16 %v145
    %v417 = vunpack.c.h.b16 %v145
    %v418 = vunpack.c.l.b16 %v146
    %v419 = vunpack.c.h.b16 %v146
    %v420 = vunpack.c.l.b16 %v147
    %v421 = vunpack.c.h.b16 %v147
    %v422 = vunpack.c.l.b16 %v148
    %v423 = vunpack.c.h.b16 %v148
    %v424 = vunpack.c.l.b16 %v149
    %v425 = vunpack.c.h.b16 %v149
    %v426 = vunpack.c.l.b16 %v150
    %v427 = vunpack.c.h.b16 %v150
    %v428 = vunpack.c.l.b16 %v151
    %v429 = vunpack.c.h.b16 %v151
    %v430 = vunpack.c.l.b16 %v152
    %v431 = vunpack.c.h.b16 %v152
    %v432 = vunpack.c.l.b16 %v153
    %v433 = vunpack.c.h.b16 %v153
    %v434 = vunpack.c.l.b16 %v154
    %v435 = vunpack.c.h.b16 %v154
    %v436 = vunpack.c.l.b16 %v155
    %v437 = vunpack.c.h.b16 %v155
    %v438 = vunpack.c.l.b16 %v156
    %v439 = vunpack.c.h.b16 %v156
    %v440 = vunpack.c.l.b16 %v157
    %v441 = vunpack.c.h.b16 %v157
    %v442 = vunpack.c.l.b16 %v158
    %v443 = vunpack.c.h.b16 %v158
    %v444 = vunpack.c.l.b16 %v159
    %v445 = vunpack.c.h.b16 %v159
    %v446 = vunpack.c.l.b16 %v160
    %v447 = vunpack.c.h.b16 %v160
    %v448 = vunpack.c.l.b16 %v161
    %v449 = vunpack.c.h.b16 %v161
    %v450 = vunpack.c.l.b16 %v162
    %v451 = vunpack.c.h.b16 %v162
    %v452 = vunpack.c.l.b16 %v163
    %v453 = vunpack.c.h.b16 %v163
    %v454 = vunpack.c.l.b16 %v164
    %v455 = vunpack.c.h.b16 %v164
    %v456 = vunpack.c.l.b16 %v165
    %v457 = vunpack.c.h.b16 %v165
    %v458 = vunpack.c.l.b16 %v166
    %v459 = vunpack.c.h.b16 %v166
    %v460 = vunpack.c.l.b16 %v167
    %v461 = vunpack.c.h.b16 %v167
    %v462 = vunpack.c.l.b16 %v168
    %v463 = vunpack.c.h.b16 %v168
    %v464 = vunpack.c.l.b16 %v169
    %v465 = vunpack.c.h.b16 %v169
    %v466 = vunpack.c.l.b16 %v170
    %v467 = vunpack.c.h.b16 %v170
    %v468 = vunpack.c.l.b16 %v171
    %v469 = vunpack.c.h.b16 %v171
    %v470 = vunpack.c.l.b16 %v172
    %v471 = vunpack.c.h.b16 %v172
    %v472 = vunpack.c.l.b16 %v173
    %v473 = vunpack.c.h.b16 %v173
    %v474 = vpack.c.b16 %v284, %v282
    %v475 = vpack.c.b16 %v285, %v283
    %v476 = vpack.c.b16 %v288, %v286
    %v477 = vpack.c.b16 %v289, %v287
    %v478 = vpack.c.b16 %v292, %v290
    %v479 = vpack.c.b16 %v293, %v291
    %v480 = vpack.c.b16 %v296, %v294
    %v481 = vpack.c.b16 %v297, %v295
    %v482 = vpack.c.b16 %v300, %v298
    %v483 = vpack.c.b16 %v301, %v299
    %v484 = vpack.c.b16 %v304, %v302
    %v485 = vpack.c.b16 %v305, %v303
    %v486 = vpack.c.b16 %v308, %v306
    %v487 = vpack.c.b16 %v309, %v307
    %v488 = vpack.c.b16 %v312, %v310
    %v489 = vpack.c.b16 %v313, %v311
    %v490 = vpack.c.b16 %v316, %v314
    %v491 = vpack.c.b16 %v317, %v315
    %v492 = vpack.c.b16 %v320, %v318
    %v493 = vpack.c.b16 %v321, %v319
    %v494 = vpack.c.b16 %v324, %v322
    %v495 = vpack.c.b16 %v325, %v323
    %v496 = vpack.c.b16 %v328, %v326
    %v497 = vpack.c.b16 %v329, %v327
    %v498 = vpack.c.b16 %v332, %v330
    %v499 = vpack.c.b16 %v333, %v331
    %v500 = vpack.c.b16 %v336, %v334
    %v501 = vpack.c.b16 %v337, %v335
    %v502 = vpack.c.b16 %v340, %v338
    %v503 = vpack.c.b16 %v341, %v339
    %v504 = vpack.c.b16 %v344, %v342
    %v505 = vpack.c.b16 %v345, %v343
    %v506 = vpack.c.b16 %v348, %v346
    %v507 = vpack.c.b16 %v349, %v347
    %v508 = vpack.c.b16 %v352, %v350
    %v509 = vpack.c.b16 %v353, %v351
    %v510 = vpack.c.b16 %v356, %v354
    %v511 = vpack.c.b16 %v357, %v355
    %v512 = vpack.c.b16 %v360, %v358
    %v513 = vpack.c.b16 %v361, %v359
    %v514 = vpack.c.b16 %v364, %v362
    %v515 = vpack.c.b16 %v365, %v363
    %v516 = vpack.c.b16 %v368, %v366
    %v517 = vpack.c.b16 %v369, %v367
    %v518 = vpack.c.b16 %v372, %v370
    %v519 = vpack.c.b16 %v373, %v371
    %v520 = vpack.c.b16 %v376, %v374
    %v521 = vpack.c.b16 %v377, %v375
    %v522 = vpack.c.b16 %v380, %v378
    %v523 = vpack.c.b16 %v381, %v379
    %v524 = vpack.c.b16 %v384, %v382
    %v525 = vpack.c.b16 %v385, %v383
    %v526 = vpack.c.b16 %v388, %v386
    %v527 = vpack.c.b16 %v389, %v387
    %v528 = vpack.c.b16 %v392, %v390
    %v529 = vpack.c.b16 %v393, %v391
    %v530 = vpack.c.b16 %v396, %v394
    %v531 = vpack.c.b16 %v397, %v395
    %v532 = vpack.c.b16 %v400, %v398
    %v533 = vpack.c.b16 %v401, %v399
    %v534 = vpack.c.b16 %v404, %v402
    %v535 = vpack.c.b16 %v405, %v403
    %v536 = vpack.c.b16 %v408, %v406
    %v537 = vpack.c.b16 %v409, %v407
    %v538 = vpack.c.b16 %v412, %v410
    %v539 = vpack.c.b16 %v413, %v411
    %v540 = vpack.c.b16 %v416, %v414
    %v541 = vpack.c.b16 %v417, %v415
    %v542 = vpack.c.b16 %v420, %v418
    %v543 = vpack.c.b16 %v421, %v419
    %v544 = vpack.c.b16 %v424, %v422
    %v545 = vpack.c.b16 %v425, %v423
    %v546 = vpack.c.b16 %v428, %v426
    %v547 = vpack.c.b16 %v429, %v427
    %v548 = vpack.c.b16 %v432, %v430
    %v549 = vpack.c.b16 %v433, %v431
    %v550 = vpack.c.b16 %v436, %v434
    %v551 = vpack.c.b16 %v437, %v435
    %v552 = vpack.c.b16 %v440, %v438
    %v553 = vpack.c.b16 %v441, %v439
    %v554 = vpack.c.b16 %v444, %v442
    %v555 = vpack.c.b16 %v445, %v443
    %v556 = vpack.c.b16 %v448, %v446
    %v557 = vpack.c.b16 %v449, %v447
    %v558 = vpack.c.b16 %v452, %v450
    %v559 = vpack.c.b16 %v453, %v451
    %v560 = vpack.c.b16 %v456, %v454
    %v561 = vpack.c.b16 %v457, %v455
    %v562 = vpack.c.b16 %v460, %v458
    %v563 = vpack.c.b16 %v461, %v459
    %v564 = vpack.c.b16 %v464, %v462
    %v565 = vpack.c.b16 %v465, %v463
    %v566 = vpack.c.b16 %v468, %v466
    %v567 = vpack.c.b16 %v469, %v467
    %v568 = vpack.c.b16 %v472, %v470
    %v569 = vpack.c.b16 %v473, %v471
    %666 = vmatprep.subr.bf16.mxu0 %v475
    %667 = vmatpush1.bf16.msra.mxu0 %v474
    %668 = vmatprep.subr.bf16.mxu0 %v477
    %669 = vmatpush1.bf16.msra.mxu0 %v476
    %670 = vmatprep.subr.bf16.mxu0 %v479
    %671 = vmatpush1.bf16.msra.mxu0 %v478
    %672 = vmatprep.subr.bf16.mxu0 %v481
    %673 = vmatpush1.bf16.msra.mxu0 %v480
    %674 = vmatprep.subr.bf16.mxu0 %v483
    %675 = vmatpush1.bf16.msra.mxu0 %v482
    %676 = vmatprep.subr.bf16.mxu0 %v485
    %677 = vmatpush1.bf16.msra.mxu0 %v484
    %678 = vmatprep.subr.bf16.mxu0 %v487
    %679 = vmatpush1.bf16.msra.mxu0 %v486
    %680 = vmatprep.subr.bf16.mxu0 %v489
    %681 = vmatpush1.bf16.msra.mxu0 %v488
    %682 = vmatprep.subr.bf16.mxu0 %v491
    %683 = vmatpush1.bf16.msra.mxu0 %v490
    %684 = vmatprep.subr.bf16.mxu0 %v493
    %685 = vmatpush1.bf16.msra.mxu0 %v492
    %686 = vmatprep.subr.bf16.mxu0 %v495
    %687 = vmatpush1.bf16.msra.mxu0 %v494
    %688 = vmatprep.subr.bf16.mxu0 %v497
    %689 = vmatpush1.bf16.msra.mxu0 %v496
    %690 = vmatprep.subr.bf16.mxu0 %v499
    %691 = vmatpush1.bf16.msra.mxu0 %v498
    %692 = vmatprep.subr.bf16.mxu0 %v501
    %693 = vmatpush1.bf16.msra.mxu0 %v500
    %694 = vmatprep.subr.bf16.mxu0 %v503
    %695 = vmatpush1.bf16.msra.mxu0 %v502
    %696 = vmatprep.subr.bf16.mxu0 %v505
    %697 = vmatpush1.bf16.msra.mxu0 %v504
    %698 = vmatprep.mubr.bf16.mxu0 %v73
    %699 = vmatmul.mubr.bf16.gmra.mrb[0].mxu0 %v72
    %v700 = vpop.f32.mrb[0].mxu0
    %v701 = vadd.f32 %v179, %v700
    %v702 = vpop.f32.mrb[0].mxu0
    %v703 = vadd.f32 %v183, %v702
    %v704 = vpop.f32.mrb[0].mxu0
    %v705 = vpop.f32.mrb[0].mxu0
    %706 = vdwg.mxu0
    %707 = vmatprep.subr.bf16.mxu0 %v507
    %708 = vmatpush1.bf16.msra.mxu0 %v506
    %709 = vmatprep.subr.bf16.mxu0 %v509
    %710 = vmatpush1.bf16.msra.mxu0 %v508
    %711 = vmatprep.subr.bf16.mxu0 %v511
    %712 = vmatpush1.bf16.msra.mxu0 %v510
    %713 = vmatprep.subr.bf16.mxu0 %v513
    %714 = vmatpush1.bf16.msra.mxu0 %v512
    %715 = vmatprep.subr.bf16.mxu0 %v515
    %716 = vmatpush1.bf16.msra.mxu0 %v514
    %717 = vmatprep.subr.bf16.mxu0 %v517
    %718 = vmatpush1.bf16.msra.mxu0 %v516
    %719 = vmatprep.subr.bf16.mxu0 %v519
    %720 = vmatpush1.bf16.msra.mxu0 %v518
    %721 = vmatprep.subr.bf16.mxu0 %v521
    %722 = vmatpush1.bf16.msra.mxu0 %v520
    %723 = vmatprep.subr.bf16.mxu0 %v523
    %724 = vmatpush1.bf16.msra.mxu0 %v522
    %725 = vmatprep.subr.bf16.mxu0 %v525
    %726 = vmatpush1.bf16.msra.mxu0 %v524
    %727 = vmatprep.subr.bf16.mxu0 %v527
    %728 = vmatpush1.bf16.msra.mxu0 %v526
    %729 = vmatprep.subr.bf16.mxu0 %v529
    %730 = vmatpush1.bf16.msra.mxu0 %v528
    %731 = vmatprep.subr.bf16.mxu0 %v531
    %732 = vmatpush1.bf16.msra.mxu0 %v530
    %733 = vmatprep.subr.bf16.mxu0 %v533
    %734 = vmatpush1.bf16.msra.mxu0 %v532
    %735 = vmatprep.subr.bf16.mxu0 %v535
    %736 = vmatpush1.bf16.msra.mxu0 %v534
    %737 = vmatprep.subr.bf16.mxu0 %v537
    %738 = vmatpush1.bf16.msra.mxu0 %v536
    %739 = vmatprep.mubr.bf16.mxu0 %v75
    %740 = vmatmul.mubr.bf16.gmra.mrb[0].mxu0 %v74
    %v741 = vpop.f32.mrb[0].mxu0
    %v742 = vadd.f32 %v701, %v741
    %v743 = vpop.f32.mrb[0].mxu0
    %v744 = vadd.f32 %v703, %v743
    %v745 = vpop.f32.mrb[0].mxu0
    %v746 = vpop.f32.mrb[0].mxu0
    %747 = vdwg.mxu0
    %748 = vmatprep.subr.bf16.mxu0 %v539
    %749 = vmatpush1.bf16.msra.mxu0 %v538
    %750 = vmatprep.subr.bf16.mxu0 %v541
    %751 = vmatpush1.bf16.msra.mxu0 %v540
    %752 = vmatprep.subr.bf16.mxu0 %v543
    %753 = vmatpush1.bf16.msra.mxu0 %v542
    %754 = vmatprep.subr.bf16.mxu0 %v545
    %755 = vmatpush1.bf16.msra.mxu0 %v544
    %756 = vmatprep.subr.bf16.mxu0 %v547
    %757 = vmatpush1.bf16.msra.mxu0 %v546
    %758 = vmatprep.subr.bf16.mxu0 %v549
    %759 = vmatpush1.bf16.msra.mxu0 %v548
    %760 = vmatprep.subr.bf16.mxu0 %v551
    %761 = vmatpush1.bf16.msra.mxu0 %v550
    %762 = vmatprep.subr.bf16.mxu0 %v553
    %763 = vmatpush1.bf16.msra.mxu0 %v552
    %764 = vmatprep.subr.bf16.mxu0 %v555
    %765 = vmatpush1.bf16.msra.mxu0 %v554
    %766 = vmatprep.subr.bf16.mxu0 %v557
    %767 = vmatpush1.bf16.msra.mxu0 %v556
    %768 = vmatprep.subr.bf16.mxu0 %v559
    %769 = vmatpush1.bf16.msra.mxu0 %v558
    %770 = vmatprep.subr.bf16.mxu0 %v561
    %771 = vmatpush1.bf16.msra.mxu0 %v560
    %772 = vmatprep.subr.bf16.mxu0 %v563
    %773 = vmatpush1.bf16.msra.mxu0 %v562
    %774 = vmatprep.subr.bf16.mxu0 %v565
    %775 = vmatpush1.bf16.msra.mxu0 %v564
    %776 = vmatprep.subr.bf16.mxu0 %v567
    %777 = vmatpush1.bf16.msra.mxu0 %v566
    %778 = vmatprep.subr.bf16.mxu0 %v569
    %779 = vmatpush1.bf16.msra.mxu0 %v568
    %780 = vmatprep.mubr.bf16.mxu0 %v77
    %781 = vmatmul.mubr.bf16.gmra.mrb[0].mxu0 %v76
    %v782 = vpop.f32.mrb[0].mxu0
    %v783 = vadd.f32 %v742, %v782
    %v784 = vpop.f32.mrb[0].mxu0
    %v785 = vadd.f32 %v744, %v784
    %v786 = vpop.f32.mrb[0].mxu0
    %v787 = vpop.f32.mrb[0].mxu0
    %788 = vdwg.mxu0
    %v789 = vadd.f32 %v783, %v785
    %790 = vadd.xlane.f32.xlu0 %v789
    %v791 = vpop.xlane.xlu0 %790
    %v792 = vrcp.pop 256.0
    %v793 = vmul.f32 %v791, %v792
    %v794 = vsub.f32 %v783, %v793
    %v795 = vsub.f32 %v785, %v793
    %v796 = vmul.f32 %v794, %v794
    %v797 = vmul.f32 %v795, %v795
    %v798 = vadd.f32 %v796, %v797
    %799 = vadd.xlane.f32.xlu0 %v798
    %v800 = vpop.xlane.xlu0 %799
    %v801 = vmul.f32 %v800, %v792
    %v802 = vadd.f32 %v801, 1e-05
    %v803 = vrsqrt.pop %v802
    %v804 = vmul.f32 %v794, %v803
    %v805 = vmul.f32 %v795, %v803
    %v806 = vld [vmem:[%s3] sm:$0x3]
    %v808 = vlaneseq
    %v809 = vshrl.u32 %v808, 7
    %v810 = vsub.s32 0, %v809
    %v811 = vrot.slane %v806, %v810
    %v812 = vlaneseq
    %v813 = vshrl.u32 %v812, 7
    %v814 = vsub.s32 1, %v813
    %v815 = vrot.slane %v806, %v814
    %v818 = vmul.f32 %v804, %v811
    %v819 = vmul.f32 %v805, %v815
    %v820 = vld [vmem:[%s4] sm:$0x3]
    %v822 = vlaneseq
    %v823 = vshrl.u32 %v822, 7
    %v824 = vsub.s32 0, %v823
    %v825 = vrot.slane %v820, %v824
    %v826 = vlaneseq
    %v827 = vshrl.u32 %v826, 7
    %v828 = vsub.s32 1, %v827
    %v829 = vrot.slane %v820, %v828
    %v832 = vadd.f32 %v818, %v825
    %v833 = vadd.f32 %v819, %v829
    %v834 = vmax.f32 %v832, 0.0
    %v835 = vmax.f32 %v833, 0.0
    %v836 = vpack.c.bf16 %v834, %v834
    %v837 = vpack.c.bf16 %v835, %v835
    %v838 = vld [vmem:[#allocation6] sm:$0xf]
    %v839 = vld [vmem:[#allocation6 + $0x4] sm:$0xf]
    %v840 = vld [vmem:[#allocation6 + $0x8] sm:$0xf]
    %v841 = vld [vmem:[#allocation6 + $0xc] sm:$0xf]
    %v842 = vld [vmem:[#allocation6 + $0x10] sm:$0xf]
    %v843 = vld [vmem:[#allocation6 + $0x14] sm:$0xf]
    %v844 = vld [vmem:[#allocation6 + $0x18] sm:$0xf]
    %v845 = vld [vmem:[#allocation6 + $0x1c] sm:$0xf]
    %v846 = vld [vmem:[#allocation6 + $0x20] sm:$0xf]
    %v847 = vld [vmem:[#allocation6 + $0x24] sm:$0xf]
    %v848 = vld [vmem:[#allocation6 + $0x28] sm:$0xf]
    %v849 = vld [vmem:[#allocation6 + $0x2c] sm:$0xf]
    %v850 = vld [vmem:[#allocation6 + $0x30] sm:$0xf]
    %v851 = vld [vmem:[#allocation6 + $0x34] sm:$0xf]
    %v852 = vld [vmem:[#allocation6 + $0x38] sm:$0xf]
    %v853 = vld [vmem:[#allocation6 + $0x3c] sm:$0xf]
    %v854 = vld [vmem:[#allocation6 + $0x40] sm:$0xf]
    %v855 = vld [vmem:[#allocation6 + $0x44] sm:$0xf]
    %v856 = vld [vmem:[#allocation6 + $0x48] sm:$0xf]
    %v857 = vld [vmem:[#allocation6 + $0x4c] sm:$0xf]
    %v858 = vld [vmem:[#allocation6 + $0x50] sm:$0xf]
    %v859 = vld [vmem:[#allocation6 + $0x54] sm:$0xf]
    %v860 = vld [vmem:[#allocation6 + $0x58] sm:$0xf]
    %v861 = vld [vmem:[#allocation6 + $0x5c] sm:$0xf]
    %v862 = vld [vmem:[#allocation6 + $0x60] sm:$0xf]
    %v863 = vld [vmem:[#allocation6 + $0x64] sm:$0xf]
    %v864 = vld [vmem:[#allocation6 + $0x68] sm:$0xf]
    %v865 = vld [vmem:[#allocation6 + $0x6c] sm:$0xf]
    %v866 = vld [vmem:[#allocation6 + $0x70] sm:$0xf]
    %v867 = vld [vmem:[#allocation6 + $0x74] sm:$0xf]
    %v868 = vld [vmem:[#allocation6 + $0x78] sm:$0xf]
    %v869 = vld [vmem:[#allocation6 + $0x7c] sm:$0xf]
    %v870 = vld [vmem:[%s6] sm:$0x1]
    %v872 = vlaneseq
    %v873 = vshrl.u32 %v872, 7
    %v874 = vsub.s32 0, %v873
    %v875 = vrot.slane %v870, %v874
    %v909 = vunpack.c.l.b16 %v838
    %v910 = vunpack.c.l.b16 %v839
    %v911 = vunpack.c.l.b16 %v840
    %v912 = vunpack.c.l.b16 %v841
    %v913 = vunpack.c.l.b16 %v842
    %v914 = vunpack.c.l.b16 %v843
    %v915 = vunpack.c.l.b16 %v844
    %v916 = vunpack.c.l.b16 %v845
    %v917 = vunpack.c.l.b16 %v846
    %v918 = vunpack.c.l.b16 %v847
    %v919 = vunpack.c.l.b16 %v848
    %v920 = vunpack.c.l.b16 %v849
    %v921 = vunpack.c.l.b16 %v850
    %v922 = vunpack.c.l.b16 %v851
    %v923 = vunpack.c.l.b16 %v852
    %v924 = vunpack.c.l.b16 %v853
    %v925 = vunpack.c.l.b16 %v854
    %v926 = vunpack.c.l.b16 %v855
    %v927 = vunpack.c.l.b16 %v856
    %v928 = vunpack.c.l.b16 %v857
    %v929 = vunpack.c.l.b16 %v858
    %v930 = vunpack.c.l.b16 %v859
    %v931 = vunpack.c.l.b16 %v860
    %v932 = vunpack.c.l.b16 %v861
    %v933 = vunpack.c.l.b16 %v862
    %v934 = vunpack.c.l.b16 %v863
    %v935 = vunpack.c.l.b16 %v864
    %v936 = vunpack.c.l.b16 %v865
    %v937 = vunpack.c.l.b16 %v866
    %v938 = vunpack.c.l.b16 %v867
    %v939 = vunpack.c.l.b16 %v868
    %v940 = vunpack.c.l.b16 %v869
    %v941 = vpack.c.b16 %v910, %v909
    %v942 = vpack.c.b16 %v912, %v911
    %v943 = vpack.c.b16 %v914, %v913
    %v944 = vpack.c.b16 %v916, %v915
    %v945 = vpack.c.b16 %v918, %v917
    %v946 = vpack.c.b16 %v920, %v919
    %v947 = vpack.c.b16 %v922, %v921
    %v948 = vpack.c.b16 %v924, %v923
    %v949 = vpack.c.b16 %v926, %v925
    %v950 = vpack.c.b16 %v928, %v927
    %v951 = vpack.c.b16 %v930, %v929
    %v952 = vpack.c.b16 %v932, %v931
    %v953 = vpack.c.b16 %v934, %v933
    %v954 = vpack.c.b16 %v936, %v935
    %v955 = vpack.c.b16 %v938, %v937
    %v956 = vpack.c.b16 %v940, %v939
    %973 = vmatprep.subr.bf16.mxu0 0
    %974 = vmatpush1.bf16.msra.mxu0 %v941
    %975 = vmatprep.subr.bf16.mxu0 0
    %976 = vmatpush1.bf16.msra.mxu0 %v942
    %977 = vmatprep.subr.bf16.mxu0 0
    %978 = vmatpush1.bf16.msra.mxu0 %v943
    %979 = vmatprep.subr.bf16.mxu0 0
    %980 = vmatpush1.bf16.msra.mxu0 %v944
    %981 = vmatprep.subr.bf16.mxu0 0
    %982 = vmatpush1.bf16.msra.mxu0 %v945
    %983 = vmatprep.subr.bf16.mxu0 0
    %984 = vmatpush1.bf16.msra.mxu0 %v946
    %985 = vmatprep.subr.bf16.mxu0 0
    %986 = vmatpush1.bf16.msra.mxu0 %v947
    %987 = vmatprep.subr.bf16.mxu0 0
    %988 = vmatpush1.bf16.msra.mxu0 %v948
    %989 = vmatprep.subr.bf16.mxu0 0
    %990 = vmatpush1.bf16.msra.mxu0 %v949
    %991 = vmatprep.subr.bf16.mxu0 0
    %992 = vmatpush1.bf16.msra.mxu0 %v950
    %993 = vmatprep.subr.bf16.mxu0 0
    %994 = vmatpush1.bf16.msra.mxu0 %v951
    %995 = vmatprep.subr.bf16.mxu0 0
    %996 = vmatpush1.bf16.msra.mxu0 %v952
    %997 = vmatprep.subr.bf16.mxu0 0
    %998 = vmatpush1.bf16.msra.mxu0 %v953
    %999 = vmatprep.subr.bf16.mxu0 0
    %1000 = vmatpush1.bf16.msra.mxu0 %v954
    %1001 = vmatprep.subr.bf16.mxu0 0
    %1002 = vmatpush1.bf16.msra.mxu0 %v955
    %1003 = vmatprep.subr.bf16.mxu0 0
    %1004 = vmatpush1.bf16.msra.mxu0 %v956
    %1005 = vmatprep.mubr.bf16.mxu0 %v837
    %1006 = vmatmul.mubr.bf16.gmra.mrb[0].mxu0 %v836
    %v1007 = vpop.f32.mrb[0].mxu0
    %v1008 = vadd.f32 %v875, %v1007
    %v1009 = vpop.f32.mrb[0].mxu0
    %v1010 = vpop.f32.mrb[0].mxu0
    %v1011 = vpop.f32.mrb[0].mxu0
    %1012 = vdwg.mxu0
    %1013 = vmax.xlane.f32.xlu0 %v1008
    %v1014 = vpop.xlane.xlu0 %1013
    %v1015 = vsub.f32 %v1008, %v1014
    %v1016 = vmul.f32 %v1015, 1.442695
    %v1017 = vpow.pop %v1016
    %1018 = vadd.xlane.f32.xlu0 %v1017
    %v1019 = vpop.xlane.xlu0 %1018
    %v1020 = vrcp.pop %v1019
    %v1021 = vmul.f32 %v1017, %v1020
    %1022 = vst [vmem:[%s7] sm:$0xff] %v1021
    // Predicated region
    $region42: #{sentiment_head.1} parent=1 // pred_check
      _
    $region43: #{sentiment_head.1} parent=1 // pred_check_branch
      %1024 = sbr.rel (0) target = $region45
    $region44: #{sentiment_head.1} parent=1 // pred_region
      _
    $region45: #{sentiment_head.1} parent=1 // pred_fallthru
      _
    // Predicated region
    $region46: #{sentiment_head.1} parent=1 // pred_check
      _
    $region47: #{sentiment_head.1} parent=1 // pred_check_branch
      %1026 = sbr.rel (0) target = $region49
    $region48: #{sentiment_head.1} parent=1 // pred_region
      _
    $region49: #{sentiment_head.1} parent=1 // pred_fallthru
      _
    %1027 = vsyncpa [#allocation3], 1
    %1028 = vsyncpa [#allocation5], 1

</llo_original>
